<compile_context>
chip_gen: v7x
topology: tpu7x:2x2x1
jax: 0.10.0
libtpu: 0.0.40
codegen_flags: <defaults>
</compile_context>

<pallas_src>
import jax
import jax.numpy as jnp
from jax import lax
from jax.experimental import pallas as pl
from jax.experimental.pallas import tpu as pltpu

INPUT_SIZE = 18
PAD_INPUT = 32          # padded feature dim (multiple of 8 sublanes)
HIDDEN = 32
GATES = 4 * HIDDEN      # 128 -> exactly one lane-width
OUTPUT = 10
SEQ = 8

# Row layout of the packed parameter slab (104 rows x 128 lanes, f32, ~53 KB).
ROW_W_IH = 0                      # rows [0, 32):   weight_ih_l0.T, rows 18..31 zero-padded
ROW_W_HH = ROW_W_IH + PAD_INPUT   # rows [32, 64):  weight_hh_l0.T
ROW_B = ROW_W_HH + HIDDEN         # row 64:         bias_ih + bias_hh
ROW_B_OUT = ROW_B + 1             # row 65:         linear bias, lanes 10..127 zero
ROW_W_OUT = 72                    # rows [72, 104): linear weight.T, lanes 10..127 zero
N_ROWS = ROW_W_OUT + HIDDEN       # 104


def pack_params(w_ih, w_hh, b_ih, b_hh, w_lin, b_lin):
    """Call ONCE at model init: pack all parameters into a single (104, 128) f32 slab."""
    p = jnp.zeros((N_ROWS, GATES), jnp.float32)
    p = p.at[ROW_W_IH:ROW_W_IH + INPUT_SIZE, :].set(jnp.asarray(w_ih, jnp.float32).T)
    p = p.at[ROW_W_HH:ROW_W_HH + HIDDEN, :].set(jnp.asarray(w_hh, jnp.float32).T)
    p = p.at[ROW_B, :].set(jnp.asarray(b_ih, jnp.float32) + jnp.asarray(b_hh, jnp.float32))
    p = p.at[ROW_B_OUT, :OUTPUT].set(jnp.asarray(b_lin, jnp.float32))
    p = p.at[ROW_W_OUT:ROW_W_OUT + HIDDEN, :OUTPUT].set(jnp.asarray(w_lin, jnp.float32).T)
    return p


def lstm_kernel(x_ref, p_ref, out_ref, gx_ref):
    """Full LSTM recurrence + final Linear, single grid point.

    x_ref:  (SEQ, PAD_INPUT)    zero-padded input sequence
    p_ref:  (N_ROWS, GATES)     packed parameter slab (see row layout above)
    out_ref:(1, GATES)          lane-padded final Linear output (cols 0..9 valid)
    gx_ref: (SEQ, GATES)        VMEM scratch for the hoisted input projection
    """
    H = HIDDEN

    # Static slices of the packed slab -> zero-cost ref views.
    w_ih = p_ref[ROW_W_IH:ROW_W_IH + PAD_INPUT, :]        # (32, 128)
    w_hh = p_ref[ROW_W_HH:ROW_W_HH + HIDDEN, :]           # (32, 128)
    b = p_ref[ROW_B:ROW_B + 1, :]                         # (1, 128)
    b_out = p_ref[ROW_B_OUT:ROW_B_OUT + 1, :]             # (1, 128)
    w_out = p_ref[ROW_W_OUT:ROW_W_OUT + HIDDEN, :]        # (32, 128)

    # Hoisted input projection: one batched matmul, off the serial path; staged in VMEM scratch.
    gx_ref[...] = (
        jnp.dot(x_ref[...], w_ih, preferred_element_type=jnp.float32) + b
    )                                                     # (SEQ, 128)

    # Hoisted lane constants: one tanh + one FMA per step replaces 4 separate activations.
    lane = lax.broadcasted_iota(jnp.int32, (1, GATES), 1)
    is_g = (lane >= 2 * H) & (lane < 3 * H)               # g-gate lanes use tanh(x)
    alpha = jnp.where(is_g, 1.0, 0.5)                     # sigmoid lanes: tanh(x/2)
    beta = jnp.where(is_g, 0.0, 0.5)                      # sigmoid(x) = 0.5*tanh(x/2) + 0.5

    h = jnp.zeros((1, H), jnp.float32)
    c = jnp.zeros((1, H), jnp.float32)

    # Fully unrolled recurrence (static SEQ=8): per step only the recurrent (1,32)@(32,128) dot,
    # one full-vreg tanh + one FMA for all gates, one tanh(c), and the c/h updates are serial.
    for t in range(SEQ):
        pre = gx_ref[t:t + 1, :] + jnp.dot(
            h, w_hh, preferred_element_type=jnp.float32
        )                                                 # (1, 128)
        tt = jnp.tanh(pre * alpha)                        # single EUP pass over all 4 gates
        act = tt * alpha + beta                           # one FMA: sigmoid/tanh per lane
        i_g = act[:, 0 * H:1 * H]
        f_g = act[:, 1 * H:2 * H]
        g_g = act[:, 2 * H:3 * H]
        o_g = act[:, 3 * H:4 * H]
        c = f_g * c + i_g * g_g
        h = o_g * jnp.tanh(c)

    # Final Linear on the last hidden state == predictions[-1]; lane-dense (1,128) store.
    out_ref[...] = (
        jnp.dot(h, w_out, preferred_element_type=jnp.float32) + b_out
    )


@jax.jit
def my_lstm_forward(x, packed_params):
    """x: (SEQ, INPUT_SIZE) float32; packed_params from pack_params(). Returns (OUTPUT,)."""
    x = jnp.asarray(x, jnp.float32)
    seq = x.shape[0]

    # Only per-call prep: zero-pad the feature dim 18 -> 32 (exact: padded cols contribute 0).
    x_p = jnp.zeros((seq, PAD_INPUT), jnp.float32).at[:, :INPUT_SIZE].set(x)

    vmem = pl.BlockSpec(memory_space=pltpu.MemorySpace.VMEM)  # fully VMEM-resident, 1 grid point

    # TODO(synk): if batch > 1 ever exists, add a leading "parallel" grid axis over sequences
    # (shards across v7x's two TensorCores) and carry (B_tile, H) h/c.
    out = pl.pallas_call(
        lstm_kernel,
        out_shape=jax.ShapeDtypeStruct((1, GATES), jnp.float32),
        in_specs=[vmem, vmem],
        out_specs=vmem,
        scratch_shapes=[pltpu.VMEM((SEQ, GATES), jnp.float32)],
    )(x_p, packed_params)
    return out[0, :OUTPUT]


def reference_forward(x, w_ih, w_hh, b_ih, b_hh, w_lin, b_lin):
    """Pure-JAX reference mirroring torch.nn.LSTM + Linear (batch=1, zero initial state)."""
    H = HIDDEN
    h = jnp.zeros((H,), jnp.float32)
    c = jnp.zeros((H,), jnp.float32)
    for t in range(x.shape[0]):
        gates = w_ih @ x[t] + b_ih + w_hh @ h + b_hh
        i = jax.nn.sigmoid(gates[0 * H:1 * H])
        f = jax.nn.sigmoid(gates[1 * H:2 * H])
        g = jnp.tanh(gates[2 * H:3 * H])
        o = jax.nn.sigmoid(gates[3 * H:4 * H])
        c = f * c + i * g
        h = o * jnp.tanh(c)
    return w_lin @ h + b_lin


if __name__ == "__main__":
    key = jax.random.PRNGKey(0)
    k = jax.random.split(key, 8)
    scale = 1.0 / jnp.sqrt(jnp.float32(HIDDEN))  # PyTorch default init range

    x = jax.random.normal(k[0], (SEQ, INPUT_SIZE), jnp.float32)
    w_ih = jax.random.uniform(k[1], (4 * HIDDEN, INPUT_SIZE), jnp.float32, -scale, scale)
    w_hh = jax.random.uniform(k[2], (4 * HIDDEN, HIDDEN), jnp.float32, -scale, scale)
    b_ih = jax.random.uniform(k[3], (4 * HIDDEN,), jnp.float32, -scale, scale)
    b_hh = jax.random.uniform(k[4], (4 * HIDDEN,), jnp.float32, -scale, scale)
    w_lin = jax.random.uniform(k[5], (OUTPUT, HIDDEN), jnp.float32, -scale, scale)
    b_lin = jax.random.uniform(k[6], (OUTPUT,), jnp.float32, -scale, scale)

    # One-time parameter packing (model init); only x padding happens per forward call.
    packed = jax.block_until_ready(pack_params(w_ih, w_hh, b_ih, b_hh, w_lin, b_lin))

    out = my_lstm_forward(x, packed)
    out = jax.block_until_ready(out)

    ref = reference_forward(x, w_ih, w_hh, b_ih, b_hh, w_lin, b_lin)
    assert out.shape == (OUTPUT,)
    assert jnp.allclose(out, ref, atol=1e-5, rtol=1e-5), (out, ref)
    print("KERNEL_OK")
</pallas_src>

<mosaic_0001>
module attributes {stable_mosaic.version = 11 : i64} {
  func.func @lstm_kernel(%arg0: memref<8x32xf32, #tpu.memory_space<vmem>>, %arg1: memref<104x128xf32, #tpu.memory_space<vmem>>, %arg2: memref<1x128xf32, #tpu.memory_space<vmem>>, %arg3: memref<8x128xf32, #tpu.memory_space<vmem>>) attributes {dimension_semantics = [], scalar_prefetch = 0 : i64, scratch_operands = 1 : i64, tpu.core_type = #tpu.core_type<tc>} {
    %c0 = arith.constant 0 : index
    %c0_0 = arith.constant 0 : index
    %0 = vector.load %arg1[%c0, %c0_0] : memref<104x128xf32, #tpu.memory_space<vmem>>, vector<32x128xf32>
    %c32 = arith.constant 32 : index
    %c0_1 = arith.constant 0 : index
    %1 = vector.load %arg1[%c32, %c0_1] : memref<104x128xf32, #tpu.memory_space<vmem>>, vector<32x128xf32>
    %c64 = arith.constant 64 : index
    %c0_2 = arith.constant 0 : index
    %2 = vector.load %arg1[%c64, %c0_2] : memref<104x128xf32, #tpu.memory_space<vmem>>, vector<1x128xf32>
    %c65 = arith.constant 65 : index
    %c0_3 = arith.constant 0 : index
    %3 = vector.load %arg1[%c65, %c0_3] : memref<104x128xf32, #tpu.memory_space<vmem>>, vector<1x128xf32>
    %c72 = arith.constant 72 : index
    %c0_4 = arith.constant 0 : index
    %4 = vector.load %arg1[%c72, %c0_4] : memref<104x128xf32, #tpu.memory_space<vmem>>, vector<32x128xf32>
    %c0_5 = arith.constant 0 : index
    %c0_6 = arith.constant 0 : index
    %5 = vector.load %arg0[%c0_5, %c0_6] : memref<8x32xf32, #tpu.memory_space<vmem>>, vector<8x32xf32>
    %cst = arith.constant dense<0.000000e+00> : vector<8x128xf32>
    %6 = tpu.matmul %5, %0, %cst {dimension_numbers = #tpu.dot_dimension_numbers<[1], [0], [0], [1], [0, 0, 1, 1], [], []>} : vector<8x32xf32>, vector<32x128xf32>, vector<8x128xf32> -> vector<8x128xf32>
    %7 = vector.broadcast %2 : vector<1x128xf32> to vector<8x128xf32>
    %8 = arith.addf %6, %7 : vector<8x128xf32>
    %c0_7 = arith.constant 0 : index
    %c0_8 = arith.constant 0 : index
    %9 = vector.load %arg3[%c0_7, %c0_8] : memref<8x128xf32, #tpu.memory_space<vmem>>, vector<8x128xf32>
    tpu.vector_store %arg3[%c0_7, %c0_8], %8 {strides = array<i32>} : memref<8x128xf32, #tpu.memory_space<vmem>>, vector<8x128xf32>,
    %10 = tpu.iota {dimensions = array<i32: 1>} : vector<1x128xi32>
    %c64_i32 = arith.constant 64 : i32
    %11 = vector.broadcast %c64_i32 : i32 to vector<1x128xi32>
    %12 = arith.cmpi sge, %10, %11 : vector<1x128xi32>
    %c96_i32 = arith.constant 96 : i32
    %13 = vector.broadcast %c96_i32 : i32 to vector<1x128xi32>
    %14 = arith.cmpi slt, %10, %13 : vector<1x128xi32>
    %15 = arith.andi %12, %14 : vector<1x128xi1>
    %cst_9 = arith.constant 1.000000e+00 : f32
    %cst_10 = arith.constant 5.000000e-01 : f32
    %16 = vector.broadcast %cst_9 : f32 to vector<1x128xf32>
    %17 = vector.broadcast %cst_10 : f32 to vector<1x128xf32>
    %18 = arith.select %15, %16, %17 : vector<1x128xi1>, vector<1x128xf32>
    %cst_11 = arith.constant 0.000000e+00 : f32
    %cst_12 = arith.constant 5.000000e-01 : f32
    %19 = vector.broadcast %cst_11 : f32 to vector<1x128xf32>
    %20 = vector.broadcast %cst_12 : f32 to vector<1x128xf32>
    %21 = arith.select %15, %19, %20 : vector<1x128xi1>, vector<1x128xf32>
    %cst_13 = arith.constant 0.000000e+00 : f32
    %22 = vector.broadcast %cst_13 : f32 to vector<1x32xf32>
    %cst_14 = arith.constant 0.000000e+00 : f32
    %23 = vector.broadcast %cst_14 : f32 to vector<1x32xf32>
    %c0_15 = arith.constant 0 : index
    %c0_16 = arith.constant 0 : index
    %24 = vector.load %arg3[%c0_15, %c0_16] : memref<8x128xf32, #tpu.memory_space<vmem>>, vector<1x128xf32>
    %cst_17 = arith.constant dense<0.000000e+00> : vector<1x128xf32>
    %25 = tpu.matmul %22, %1, %cst_17 {dimension_numbers = #tpu.dot_dimension_numbers<[1], [0], [0], [1], [0, 0, 1, 1], [], []>} : vector<1x32xf32>, vector<32x128xf32>, vector<1x128xf32> -> vector<1x128xf32>
    %26 = arith.addf %24, %25 : vector<1x128xf32>
    %27 = arith.mulf %26, %18 : vector<1x128xf32>
    %28 = math.tanh %27 : vector<1x128xf32>
    %29 = arith.mulf %28, %18 : vector<1x128xf32>
    %30 = arith.addf %29, %21 : vector<1x128xf32>
    %31 = vector.extract_strided_slice %30 {offsets = [0, 0], sizes = [1, 32], strides = [1, 1]} : vector<1x128xf32> to vector<1x32xf32>
    %32 = vector.extract_strided_slice %30 {offsets = [0, 32], sizes = [1, 32], strides = [1, 1]} : vector<1x128xf32> to vector<1x32xf32>
    %33 = vector.extract_strided_slice %30 {offsets = [0, 64], sizes = [1, 32], strides = [1, 1]} : vector<1x128xf32> to vector<1x32xf32>
    %34 = vector.extract_strided_slice %30 {offsets = [0, 96], sizes = [1, 32], strides = [1, 1]} : vector<1x128xf32> to vector<1x32xf32>
    %35 = arith.mulf %32, %23 : vector<1x32xf32>
    %36 = arith.mulf %31, %33 : vector<1x32xf32>
    %37 = arith.addf %35, %36 : vector<1x32xf32>
    %38 = math.tanh %37 : vector<1x32xf32>
    %39 = arith.mulf %34, %38 : vector<1x32xf32>
    %c1 = arith.constant 1 : index
    %c0_18 = arith.constant 0 : index
    %40 = vector.load %arg3[%c1, %c0_18] : memref<8x128xf32, #tpu.memory_space<vmem>>, vector<1x128xf32>
    %cst_19 = arith.constant dense<0.000000e+00> : vector<1x128xf32>
    %41 = tpu.matmul %39, %1, %cst_19 {dimension_numbers = #tpu.dot_dimension_numbers<[1], [0], [0], [1], [0, 0, 1, 1], [], []>} : vector<1x32xf32>, vector<32x128xf32>, vector<1x128xf32> -> vector<1x128xf32>
    %42 = arith.addf %40, %41 : vector<1x128xf32>
    %43 = arith.mulf %42, %18 : vector<1x128xf32>
    %44 = math.tanh %43 : vector<1x128xf32>
    %45 = arith.mulf %44, %18 : vector<1x128xf32>
    %46 = arith.addf %45, %21 : vector<1x128xf32>
    %47 = vector.extract_strided_slice %46 {offsets = [0, 0], sizes = [1, 32], strides = [1, 1]} : vector<1x128xf32> to vector<1x32xf32>
    %48 = vector.extract_strided_slice %46 {offsets = [0, 32], sizes = [1, 32], strides = [1, 1]} : vector<1x128xf32> to vector<1x32xf32>
    %49 = vector.extract_strided_slice %46 {offsets = [0, 64], sizes = [1, 32], strides = [1, 1]} : vector<1x128xf32> to vector<1x32xf32>
    %50 = vector.extract_strided_slice %46 {offsets = [0, 96], sizes = [1, 32], strides = [1, 1]} : vector<1x128xf32> to vector<1x32xf32>
    %51 = arith.mulf %48, %37 : vector<1x32xf32>
    %52 = arith.mulf %47, %49 : vector<1x32xf32>
    %53 = arith.addf %51, %52 : vector<1x32xf32>
    %54 = math.tanh %53 : vector<1x32xf32>
    %55 = arith.mulf %50, %54 : vector<1x32xf32>
    %c2 = arith.constant 2 : index
    %c0_20 = arith.constant 0 : index
    %56 = vector.load %arg3[%c2, %c0_20] : memref<8x128xf32, #tpu.memory_space<vmem>>, vector<1x128xf32>
    %cst_21 = arith.constant dense<0.000000e+00> : vector<1x128xf32>
    %57 = tpu.matmul %55, %1, %cst_21 {dimension_numbers = #tpu.dot_dimension_numbers<[1], [0], [0], [1], [0, 0, 1, 1], [], []>} : vector<1x32xf32>, vector<32x128xf32>, vector<1x128xf32> -> vector<1x128xf32>
    %58 = arith.addf %56, %57 : vector<1x128xf32>
    %59 = arith.mulf %58, %18 : vector<1x128xf32>
    %60 = math.tanh %59 : vector<1x128xf32>
    %61 = arith.mulf %60, %18 : vector<1x128xf32>
    %62 = arith.addf %61, %21 : vector<1x128xf32>
    %63 = vector.extract_strided_slice %62 {offsets = [0, 0], sizes = [1, 32], strides = [1, 1]} : vector<1x128xf32> to vector<1x32xf32>
    %64 = vector.extract_strided_slice %62 {offsets = [0, 32], sizes = [1, 32], strides = [1, 1]} : vector<1x128xf32> to vector<1x32xf32>
    %65 = vector.extract_strided_slice %62 {offsets = [0, 64], sizes = [1, 32], strides = [1, 1]} : vector<1x128xf32> to vector<1x32xf32>
    %66 = vector.extract_strided_slice %62 {offsets = [0, 96], sizes = [1, 32], strides = [1, 1]} : vector<1x128xf32> to vector<1x32xf32>
    %67 = arith.mulf %64, %53 : vector<1x32xf32>
    %68 = arith.mulf %63, %65 : vector<1x32xf32>
    %69 = arith.addf %67, %68 : vector<1x32xf32>
    %70 = math.tanh %69 : vector<1x32xf32>
    %71 = arith.mulf %66, %70 : vector<1x32xf32>
    %c3 = arith.constant 3 : index
    %c0_22 = arith.constant 0 : index
    %72 = vector.load %arg3[%c3, %c0_22] : memref<8x128xf32, #tpu.memory_space<vmem>>, vector<1x128xf32>
    %cst_23 = arith.constant dense<0.000000e+00> : vector<1x128xf32>
    %73 = tpu.matmul %71, %1, %cst_23 {dimension_numbers = #tpu.dot_dimension_numbers<[1], [0], [0], [1], [0, 0, 1, 1], [], []>} : vector<1x32xf32>, vector<32x128xf32>, vector<1x128xf32> -> vector<1x128xf32>
    %74 = arith.addf %72, %73 : vector<1x128xf32>
    %75 = arith.mulf %74, %18 : vector<1x128xf32>
    %76 = math.tanh %75 : vector<1x128xf32>
    %77 = arith.mulf %76, %18 : vector<1x128xf32>
    %78 = arith.addf %77, %21 : vector<1x128xf32>
    %79 = vector.extract_strided_slice %78 {offsets = [0, 0], sizes = [1, 32], strides = [1, 1]} : vector<1x128xf32> to vector<1x32xf32>
    %80 = vector.extract_strided_slice %78 {offsets = [0, 32], sizes = [1, 32], strides = [1, 1]} : vector<1x128xf32> to vector<1x32xf32>
    %81 = vector.extract_strided_slice %78 {offsets = [0, 64], sizes = [1, 32], strides = [1, 1]} : vector<1x128xf32> to vector<1x32xf32>
    %82 = vector.extract_strided_slice %78 {offsets = [0, 96], sizes = [1, 32], strides = [1, 1]} : vector<1x128xf32> to vector<1x32xf32>
    %83 = arith.mulf %80, %69 : vector<1x32xf32>
    %84 = arith.mulf %79, %81 : vector<1x32xf32>
    %85 = arith.addf %83, %84 : vector<1x32xf32>
    %86 = math.tanh %85 : vector<1x32xf32>
    %87 = arith.mulf %82, %86 : vector<1x32xf32>
    %c4 = arith.constant 4 : index
    %c0_24 = arith.constant 0 : index
    %88 = vector.load %arg3[%c4, %c0_24] : memref<8x128xf32, #tpu.memory_space<vmem>>, vector<1x128xf32>
    %cst_25 = arith.constant dense<0.000000e+00> : vector<1x128xf32>
    %89 = tpu.matmul %87, %1, %cst_25 {dimension_numbers = #tpu.dot_dimension_numbers<[1], [0], [0], [1], [0, 0, 1, 1], [], []>} : vector<1x32xf32>, vector<32x128xf32>, vector<1x128xf32> -> vector<1x128xf32>
    %90 = arith.addf %88, %89 : vector<1x128xf32>
    %91 = arith.mulf %90, %18 : vector<1x128xf32>
    %92 = math.tanh %91 : vector<1x128xf32>
    %93 = arith.mulf %92, %18 : vector<1x128xf32>
    %94 = arith.addf %93, %21 : vector<1x128xf32>
    %95 = vector.extract_strided_slice %94 {offsets = [0, 0], sizes = [1, 32], strides = [1, 1]} : vector<1x128xf32> to vector<1x32xf32>
    %96 = vector.extract_strided_slice %94 {offsets = [0, 32], sizes = [1, 32], strides = [1, 1]} : vector<1x128xf32> to vector<1x32xf32>
    %97 = vector.extract_strided_slice %94 {offsets = [0, 64], sizes = [1, 32], strides = [1, 1]} : vector<1x128xf32> to vector<1x32xf32>
    %98 = vector.extract_strided_slice %94 {offsets = [0, 96], sizes = [1, 32], strides = [1, 1]} : vector<1x128xf32> to vector<1x32xf32>
    %99 = arith.mulf %96, %85 : vector<1x32xf32>
    %100 = arith.mulf %95, %97 : vector<1x32xf32>
    %101 = arith.addf %99, %100 : vector<1x32xf32>
    %102 = math.tanh %101 : vector<1x32xf32>
    %103 = arith.mulf %98, %102 : vector<1x32xf32>
    %c5 = arith.constant 5 : index
    %c0_26 = arith.constant 0 : index
    %104 = vector.load %arg3[%c5, %c0_26] : memref<8x128xf32, #tpu.memory_space<vmem>>, vector<1x128xf32>
    %cst_27 = arith.constant dense<0.000000e+00> : vector<1x128xf32>
    %105 = tpu.matmul %103, %1, %cst_27 {dimension_numbers = #tpu.dot_dimension_numbers<[1], [0], [0], [1], [0, 0, 1, 1], [], []>} : vector<1x32xf32>, vector<32x128xf32>, vector<1x128xf32> -> vector<1x128xf32>
    %106 = arith.addf %104, %105 : vector<1x128xf32>
    %107 = arith.mulf %106, %18 : vector<1x128xf32>
    %108 = math.tanh %107 : vector<1x128xf32>
    %109 = arith.mulf %108, %18 : vector<1x128xf32>
    %110 = arith.addf %109, %21 : vector<1x128xf32>
    %111 = vector.extract_strided_slice %110 {offsets = [0, 0], sizes = [1, 32], strides = [1, 1]} : vector<1x128xf32> to vector<1x32xf32>
    %112 = vector.extract_strided_slice %110 {offsets = [0, 32], sizes = [1, 32], strides = [1, 1]} : vector<1x128xf32> to vector<1x32xf32>
    %113 = vector.extract_strided_slice %110 {offsets = [0, 64], sizes = [1, 32], strides = [1, 1]} : vector<1x128xf32> to vector<1x32xf32>
    %114 = vector.extract_strided_slice %110 {offsets = [0, 96], sizes = [1, 32], strides = [1, 1]} : vector<1x128xf32> to vector<1x32xf32>
    %115 = arith.mulf %112, %101 : vector<1x32xf32>
    %116 = arith.mulf %111, %113 : vector<1x32xf32>
    %117 = arith.addf %115, %116 : vector<1x32xf32>
    %118 = math.tanh %117 : vector<1x32xf32>
    %119 = arith.mulf %114, %118 : vector<1x32xf32>
    %c6 = arith.constant 6 : index
    %c0_28 = arith.constant 0 : index
    %120 = vector.load %arg3[%c6, %c0_28] : memref<8x128xf32, #tpu.memory_space<vmem>>, vector<1x128xf32>
    %cst_29 = arith.constant dense<0.000000e+00> : vector<1x128xf32>
    %121 = tpu.matmul %119, %1, %cst_29 {dimension_numbers = #tpu.dot_dimension_numbers<[1], [0], [0], [1], [0, 0, 1, 1], [], []>} : vector<1x32xf32>, vector<32x128xf32>, vector<1x128xf32> -> vector<1x128xf32>
    %122 = arith.addf %120, %121 : vector<1x128xf32>
    %123 = arith.mulf %122, %18 : vector<1x128xf32>
    %124 = math.tanh %123 : vector<1x128xf32>
    %125 = arith.mulf %124, %18 : vector<1x128xf32>
    %126 = arith.addf %125, %21 : vector<1x128xf32>
    %127 = vector.extract_strided_slice %126 {offsets = [0, 0], sizes = [1, 32], strides = [1, 1]} : vector<1x128xf32> to vector<1x32xf32>
    %128 = vector.extract_strided_slice %126 {offsets = [0, 32], sizes = [1, 32], strides = [1, 1]} : vector<1x128xf32> to vector<1x32xf32>
    %129 = vector.extract_strided_slice %126 {offsets = [0, 64], sizes = [1, 32], strides = [1, 1]} : vector<1x128xf32> to vector<1x32xf32>
    %130 = vector.extract_strided_slice %126 {offsets = [0, 96], sizes = [1, 32], strides = [1, 1]} : vector<1x128xf32> to vector<1x32xf32>
    %131 = arith.mulf %128, %117 : vector<1x32xf32>
    %132 = arith.mulf %127, %129 : vector<1x32xf32>
    %133 = arith.addf %131, %132 : vector<1x32xf32>
    %134 = math.tanh %133 : vector<1x32xf32>
    %135 = arith.mulf %130, %134 : vector<1x32xf32>
    %c7 = arith.constant 7 : index
    %c0_30 = arith.constant 0 : index
    %136 = vector.load %arg3[%c7, %c0_30] : memref<8x128xf32, #tpu.memory_space<vmem>>, vector<1x128xf32>
    %cst_31 = arith.constant dense<0.000000e+00> : vector<1x128xf32>
    %137 = tpu.matmul %135, %1, %cst_31 {dimension_numbers = #tpu.dot_dimension_numbers<[1], [0], [0], [1], [0, 0, 1, 1], [], []>} : vector<1x32xf32>, vector<32x128xf32>, vector<1x128xf32> -> vector<1x128xf32>
    %138 = arith.addf %136, %137 : vector<1x128xf32>
    %139 = arith.mulf %138, %18 : vector<1x128xf32>
    %140 = math.tanh %139 : vector<1x128xf32>
    %141 = arith.mulf %140, %18 : vector<1x128xf32>
    %142 = arith.addf %141, %21 : vector<1x128xf32>
    %143 = vector.extract_strided_slice %142 {offsets = [0, 0], sizes = [1, 32], strides = [1, 1]} : vector<1x128xf32> to vector<1x32xf32>
    %144 = vector.extract_strided_slice %142 {offsets = [0, 32], sizes = [1, 32], strides = [1, 1]} : vector<1x128xf32> to vector<1x32xf32>
    %145 = vector.extract_strided_slice %142 {offsets = [0, 64], sizes = [1, 32], strides = [1, 1]} : vector<1x128xf32> to vector<1x32xf32>
    %146 = vector.extract_strided_slice %142 {offsets = [0, 96], sizes = [1, 32], strides = [1, 1]} : vector<1x128xf32> to vector<1x32xf32>
    %147 = arith.mulf %144, %133 : vector<1x32xf32>
    %148 = arith.mulf %143, %145 : vector<1x32xf32>
    %149 = arith.addf %147, %148 : vector<1x32xf32>
    %150 = math.tanh %149 : vector<1x32xf32>
    %151 = arith.mulf %146, %150 : vector<1x32xf32>
    %cst_32 = arith.constant dense<0.000000e+00> : vector<1x128xf32>
    %152 = tpu.matmul %151, %4, %cst_32 {dimension_numbers = #tpu.dot_dimension_numbers<[1], [0], [0], [1], [0, 0, 1, 1], [], []>} : vector<1x32xf32>, vector<32x128xf32>, vector<1x128xf32> -> vector<1x128xf32>
    %153 = arith.addf %152, %3 : vector<1x128xf32>
    %c0_33 = arith.constant 0 : index
    %c0_34 = arith.constant 0 : index
    %154 = vector.load %arg2[%c0_33, %c0_34] : memref<1x128xf32, #tpu.memory_space<vmem>>, vector<1x128xf32>
    tpu.vector_store %arg2[%c0_33, %c0_34], %153 {strides = array<i32>} : memref<1x128xf32, #tpu.memory_space<vmem>>, vector<1x128xf32>,
    return
  }
}

</mosaic_0001>

<llo_original>
// kernel: my_lstm_forward.1
$region0: #{my_lstm_forward.1}
  #allocation0 [shape = 'u32[]', space=smem, size = 0x4, offset = 0x4, fixed_abs, tag = 'smem constant byte address 0x4 - core index']
  #allocation1 [shape = 'u32[144,128]{1,0:T(1,128)}', space=vmem, size = 0x12000, scoped, tag = 'internal scratch']
  #allocation2 [shape = 'f32[8,128]{1,0:T(8,128)}', space=vmem, size = 0x1000, scoped, tag = 'scratch operand']
  %s0 = inlined_call_operand.vmem [shape: f32[8,32], index: 0, kind: input, shape index: {}]
  %s1 = inlined_call_operand.hbm [shape: f32[104,128], index: 1, kind: input, shape index: {}]
  %s2 = inlined_call_operand.vmem [shape: f32[1,128], index: 2, kind: output, shape index: {}]
  %s3 = sld [smem:[#allocation0]]
  $region22: #{my_lstm_forward.1} parent=0
    _
  %s5 = ssub.s32 1, %s3
  %s6 = scalar_select 0, %s5, %s3
  $region1: #{my_lstm_forward.1} parent=0
    #allocation3 [shape = 'u8[53248]{0}', space=vmem, size = 0xd000, scoped, tag = 'input window, operand 1, single buffered']
    #allocation4 [shape = 's32[1]{0}', space=sflag, size = 0x4, scoped, tag = 'scoped memory for my_lstm_forward.1']
    %7 = vsyncpa [#allocation4], 0
    // Predicated region
    $region2: #{my_lstm_forward.1} parent=1 // pred_check
      _
    $region3: #{my_lstm_forward.1} parent=1 // pred_check_branch
      %9 = sbr.rel (0) target = $region5
    $region4: #{my_lstm_forward.1} parent=1 // pred_region
      _
    $region5: #{my_lstm_forward.1} parent=1 // pred_fallthru
      _
    // Predicated region
    $region6: #{my_lstm_forward.1} parent=1 // pred_check
      _
    $region7: #{my_lstm_forward.1} parent=1 // pred_check_branch
      %11 = sbr.rel (0) target = $region9
    $region8: #{my_lstm_forward.1} parent=1 // pred_region
      %s13 = ssub.s32 1664, 1664
      %14 = vsyncadd [#allocation4], %s13
      %s15 = sshll.u32 [#allocation3], 4
      %s16 = int_to_ptr.vmem [resolvable:$true] %s15
      %21 = dma.hbm_to_vmem [thread:$0]  %s1, 1664, %s16, [#allocation4], 128, 128, 8
    $region9: #{my_lstm_forward.1} parent=1 // pred_fallthru
      _
    // Predicated region
    $region10: #{my_lstm_forward.1} parent=1 // pred_check
      _
    $region11: #{my_lstm_forward.1} parent=1 // pred_check_branch
      %23 = sbr.rel (0) target = $region13
    $region12: #{my_lstm_forward.1} parent=1 // pred_region
      %24 = dma.done [#allocation4], 1664
    $region13: #{my_lstm_forward.1} parent=1 // pred_fallthru
      _
    %v25 = vld [vmem:[#allocation3] sm:$0xff]
    %v26 = vld [vmem:[#allocation3 + $0x8] sm:$0xff]
    %v27 = vld [vmem:[#allocation3 + $0x10] sm:$0xff]
    %v28 = vld [vmem:[#allocation3 + $0x18] sm:$0xff]
    %v29 = vld [vmem:[#allocation3 + $0x20] sm:$0xff]
    %v30 = vld [vmem:[#allocation3 + $0x28] sm:$0xff]
    %v31 = vld [vmem:[#allocation3 + $0x30] sm:$0xff]
    %v32 = vld [vmem:[#allocation3 + $0x38] sm:$0xff]
    %v33 = vld [vmem:[#allocation3 + $0x40] sm:$0x1]
    %v34 = vld [vmem:[#allocation3 + $0x41] sm:$0x1]
    %v35 = vld [vmem:[#allocation3 + $0x48] sm:$0xff]
    %v36 = vld [vmem:[#allocation3 + $0x50] sm:$0xff]
    %v37 = vld [vmem:[#allocation3 + $0x58] sm:$0xff]
    %v38 = vld [vmem:[#allocation3 + $0x60] sm:$0xff]
    %v39 = vld [vmem:[%s0] sm:$0xff]
    %v40 = vlaneseq
    %v41 = vshrl.u32 %v40, 7
    %v42 = vsub.s32 0, %v41
    %v43 = vrot.slane %v33, %v42
    %vm44 = vcmask 261120
    %v46 = vsel %vm44, %v39, 0
    %48 = vmatprep.subr.mxu0 0.0
    %49 = vmatpush1.msra.mxu0 %v25
    %50 = vmatprep.subr.mxu0 0.0
    %51 = vmatpush1.msra.mxu0 %v26
    %52 = vmatprep.subr.mxu0 0.0
    %53 = vmatpush1.msra.mxu0 %v27
    %54 = vmatprep.subr.mxu0 0.0
    %55 = vmatpush1.msra.mxu0 %v28
    %56 = vmatprep.subr.mxu0 0.0
    %57 = vmatpush1.msra.mxu0 0.0
    %58 = vmatprep.subr.mxu0 0.0
    %59 = vmatpush1.msra.mxu0 0.0
    %60 = vmatprep.subr.mxu0 0.0
    %61 = vmatpush1.msra.mxu0 0.0
    %62 = vmatprep.subr.mxu0 0.0
    %63 = vmatpush1.msra.mxu0 0.0
    %64 = vmatprep.subr.mxu0 0.0
    %65 = vmatpush1.msra.mxu0 0.0
    %66 = vmatprep.subr.mxu0 0.0
    %67 = vmatpush1.msra.mxu0 0.0
    %68 = vmatprep.subr.mxu0 0.0
    %69 = vmatpush1.msra.mxu0 0.0
    %70 = vmatprep.subr.mxu0 0.0
    %71 = vmatpush1.msra.mxu0 0.0
    %72 = vmatprep.subr.mxu0 0.0
    %73 = vmatpush1.msra.mxu0 0.0
    %74 = vmatprep.subr.mxu0 0.0
    %75 = vmatpush1.msra.mxu0 0.0
    %76 = vmatprep.subr.mxu0 0.0
    %77 = vmatpush1.msra.mxu0 0.0
    %78 = vmatprep.subr.mxu0 0.0
    %79 = vmatpush1.msra.mxu0 0.0
    %80 = vmatprep.subr.mxu0 0.0
    %81 = vmatpush1.msra.mxu0 0.0
    %82 = vmatprep.subr.mxu0 0.0
    %83 = vmatpush1.msra.mxu0 0.0
    %84 = vmatprep.subr.mxu0 0.0
    %85 = vmatpush1.msra.mxu0 0.0
    %86 = vmatprep.subr.mxu0 0.0
    %87 = vmatpush1.msra.mxu0 0.0
    %88 = vmatprep.subr.mxu0 0.0
    %89 = vmatpush1.msra.mxu0 0.0
    %90 = vmatprep.subr.mxu0 0.0
    %91 = vmatpush1.msra.mxu0 0.0
    %92 = vmatprep.subr.mxu0 0.0
    %93 = vmatpush1.msra.mxu0 0.0
    %94 = vmatprep.subr.mxu0 0.0
    %95 = vmatpush1.msra.mxu0 0.0
    %96 = vmatprep.subr.mxu0 0.0
    %97 = vmatpush1.msra.mxu0 0.0
    %98 = vmatprep.subr.mxu0 0.0
    %99 = vmatpush1.msra.mxu0 0.0
    %100 = vmatprep.subr.mxu0 0.0
    %101 = vmatpush1.msra.mxu0 0.0
    %102 = vmatprep.subr.mxu0 0.0
    %103 = vmatpush1.msra.mxu0 0.0
    %104 = vmatprep.subr.mxu0 0.0
    %105 = vmatpush1.msra.mxu0 0.0
    %106 = vmatprep.subr.mxu0 0.0
    %107 = vmatpush1.msra.mxu0 0.0
    %108 = vmatprep.subr.mxu0 0.0
    %109 = vmatpush1.msra.mxu0 0.0
    %110 = vmatprep.subr.mxu0 0.0
    %111 = vmatpush1.msra.mxu0 0.0
    %112 = vmatprep.mubr.f32.mxu0 0.0
    %113 = vmatmul.mubr.f32.gmra.mrb[0].mxu0 %v46
    %v114 = vpop.f32.mrb[0].mxu0
    %v115 = vadd.f32 %v43, %v114
    %v116 = vpop.f32.mrb[0].mxu0
    %117 = vdwg.mxu0
    %118 = vst [vmem:[#allocation2] sm:$0xff] %v115
    %v119 = vlaneseq
    %v120 = vand.u32 %v119, 127
    %vm121 = vcmp.ge.s32.totalorder %v120, 64
    %vm122 = vcmp.lt.s32.totalorder %v120, 96
    %vm123 = vmand %vm121, %vm122
    %v124 = vsel %vm123, 1.0, 0.5
    %v125 = vsel %vm123, 0.0, 0.5
    %v126 = vld [vmem:[#allocation2] sm:$0x1]
    %v128 = vsel %vm44, 0.0, 0
    %130 = vmatprep.subr.mxu0 0.0
    %131 = vmatpush1.msra.mxu0 %v29
    %132 = vmatprep.subr.mxu0 0.0
    %133 = vmatpush1.msra.mxu0 %v30
    %134 = vmatprep.subr.mxu0 0.0
    %135 = vmatpush1.msra.mxu0 %v31
    %136 = vmatprep.subr.mxu0 0.0
    %137 = vmatpush1.msra.mxu0 %v32
    %138 = vmatprep.subr.mxu0 0.0
    %139 = vmatpush1.msra.mxu0 0.0
    %140 = vmatprep.subr.mxu0 0.0
    %141 = vmatpush1.msra.mxu0 0.0
    %142 = vmatprep.subr.mxu0 0.0
    %143 = vmatpush1.msra.mxu0 0.0
    %144 = vmatprep.subr.mxu0 0.0
    %145 = vmatpush1.msra.mxu0 0.0
    %146 = vmatprep.subr.mxu0 0.0
    %147 = vmatpush1.msra.mxu0 0.0
    %148 = vmatprep.subr.mxu0 0.0
    %149 = vmatpush1.msra.mxu0 0.0
    %150 = vmatprep.subr.mxu0 0.0
    %151 = vmatpush1.msra.mxu0 0.0
    %152 = vmatprep.subr.mxu0 0.0
    %153 = vmatpush1.msra.mxu0 0.0
    %154 = vmatprep.subr.mxu0 0.0
    %155 = vmatpush1.msra.mxu0 0.0
    %156 = vmatprep.subr.mxu0 0.0
    %157 = vmatpush1.msra.mxu0 0.0
    %158 = vmatprep.subr.mxu0 0.0
    %159 = vmatpush1.msra.mxu0 0.0
    %160 = vmatprep.subr.mxu0 0.0
    %161 = vmatpush1.msra.mxu0 0.0
    %162 = vmatprep.subr.mxu0 0.0
    %163 = vmatpush1.msra.mxu0 0.0
    %164 = vmatprep.subr.mxu0 0.0
    %165 = vmatpush1.msra.mxu0 0.0
    %166 = vmatprep.subr.mxu0 0.0
    %167 = vmatpush1.msra.mxu0 0.0
    %168 = vmatprep.subr.mxu0 0.0
    %169 = vmatpush1.msra.mxu0 0.0
    %170 = vmatprep.subr.mxu0 0.0
    %171 = vmatpush1.msra.mxu0 0.0
    %172 = vmatprep.subr.mxu0 0.0
    %173 = vmatpush1.msra.mxu0 0.0
    %174 = vmatprep.subr.mxu0 0.0
    %175 = vmatpush1.msra.mxu0 0.0
    %176 = vmatprep.subr.mxu0 0.0
    %177 = vmatpush1.msra.mxu0 0.0
    %178 = vmatprep.subr.mxu0 0.0
    %179 = vmatpush1.msra.mxu0 0.0
    %180 = vmatprep.subr.mxu0 0.0
    %181 = vmatpush1.msra.mxu0 0.0
    %182 = vmatprep.subr.mxu0 0.0
    %183 = vmatpush1.msra.mxu0 0.0
    %184 = vmatprep.subr.mxu0 0.0
    %185 = vmatpush1.msra.mxu0 0.0
    %186 = vmatprep.subr.mxu0 0.0
    %187 = vmatpush1.msra.mxu0 0.0
    %188 = vmatprep.subr.mxu0 0.0
    %189 = vmatpush1.msra.mxu0 0.0
    %190 = vmatprep.subr.mxu0 0.0
    %191 = vmatpush1.msra.mxu0 0.0
    %192 = vmatprep.subr.mxu0 0.0
    %193 = vmatpush1.msra.mxu0 0.0
    %194 = vmatprep.mubr.f32.mxu0 0.0
    %195 = vmatmul.mubr.f32.gmra.mrb[0].mxu0 %v128
    %v196 = vpop.f32.mrb[0].mxu0
    %v197 = vadd.f32 0.0, %v196
    %v198 = vpop.f32.mrb[0].mxu0
    %199 = vdwg.mxu0
    %v200 = vadd.f32 %v126, %v197
    %v201 = vmul.f32 %v200, %v124
    %v202 = vtanh.pop %v201
    %v203 = vmul.f32 %v202, %v124
    %v204 = vadd.f32 %v203, %v125
    %v205 = vmul.f32 %v204, 0.0
    %207 = vrot.lane.b32.xlu0 %v204, 64
    %v208 = vpop.permute.xlu0 %207
    %v210 = vmul.f32 %v204, %v208
    %212 = vrot.lane.b32.xlu0 %v210, 32
    %v213 = vpop.permute.xlu0 %212
    %v215 = vadd.f32 %v205, %v213
    %v216 = vtanh.pop %v215
    %218 = vrot.lane.b32.xlu0 %v216, 64
    %v219 = vpop.permute.xlu0 %218
    %v221 = vmul.f32 %v204, %v219
    %v222 = vld [vmem:[#allocation2 + $0x1] sm:$0x1]
    %224 = vrot.lane.b32.xlu0 %v221, 32
    %v225 = vpop.permute.xlu0 %224
    %v226 = vsel %vm44, %v225, 0
    %228 = vmatprep.subr.mxu0 0.0
    %229 = vmatpush1.msra.mxu0 %v29
    %230 = vmatprep.subr.mxu0 0.0
    %231 = vmatpush1.msra.mxu0 %v30
    %232 = vmatprep.subr.mxu0 0.0
    %233 = vmatpush1.msra.mxu0 %v31
    %234 = vmatprep.subr.mxu0 0.0
    %235 = vmatpush1.msra.mxu0 %v32
    %236 = vmatprep.subr.mxu0 0.0
    %237 = vmatpush1.msra.mxu0 0.0
    %238 = vmatprep.subr.mxu0 0.0
    %239 = vmatpush1.msra.mxu0 0.0
    %240 = vmatprep.subr.mxu0 0.0
    %241 = vmatpush1.msra.mxu0 0.0
    %242 = vmatprep.subr.mxu0 0.0
    %243 = vmatpush1.msra.mxu0 0.0
    %244 = vmatprep.subr.mxu0 0.0
    %245 = vmatpush1.msra.mxu0 0.0
    %246 = vmatprep.subr.mxu0 0.0
    %247 = vmatpush1.msra.mxu0 0.0
    %248 = vmatprep.subr.mxu0 0.0
    %249 = vmatpush1.msra.mxu0 0.0
    %250 = vmatprep.subr.mxu0 0.0
    %251 = vmatpush1.msra.mxu0 0.0
    %252 = vmatprep.subr.mxu0 0.0
    %253 = vmatpush1.msra.mxu0 0.0
    %254 = vmatprep.subr.mxu0 0.0
    %255 = vmatpush1.msra.mxu0 0.0
    %256 = vmatprep.subr.mxu0 0.0
    %257 = vmatpush1.msra.mxu0 0.0
    %258 = vmatprep.subr.mxu0 0.0
    %259 = vmatpush1.msra.mxu0 0.0
    %260 = vmatprep.subr.mxu0 0.0
    %261 = vmatpush1.msra.mxu0 0.0
    %262 = vmatprep.subr.mxu0 0.0
    %263 = vmatpush1.msra.mxu0 0.0
    %264 = vmatprep.subr.mxu0 0.0
    %265 = vmatpush1.msra.mxu0 0.0
    %266 = vmatprep.subr.mxu0 0.0
    %267 = vmatpush1.msra.mxu0 0.0
    %268 = vmatprep.subr.mxu0 0.0
    %269 = vmatpush1.msra.mxu0 0.0
    %270 = vmatprep.subr.mxu0 0.0
    %271 = vmatpush1.msra.mxu0 0.0
    %272 = vmatprep.subr.mxu0 0.0
    %273 = vmatpush1.msra.mxu0 0.0
    %274 = vmatprep.subr.mxu0 0.0
    %275 = vmatpush1.msra.mxu0 0.0
    %276 = vmatprep.subr.mxu0 0.0
    %277 = vmatpush1.msra.mxu0 0.0
    %278 = vmatprep.subr.mxu0 0.0
    %279 = vmatpush1.msra.mxu0 0.0
    %280 = vmatprep.subr.mxu0 0.0
    %281 = vmatpush1.msra.mxu0 0.0
    %282 = vmatprep.subr.mxu0 0.0
    %283 = vmatpush1.msra.mxu0 0.0
    %284 = vmatprep.subr.mxu0 0.0
    %285 = vmatpush1.msra.mxu0 0.0
    %286 = vmatprep.subr.mxu0 0.0
    %287 = vmatpush1.msra.mxu0 0.0
    %288 = vmatprep.subr.mxu0 0.0
    %289 = vmatpush1.msra.mxu0 0.0
    %290 = vmatprep.subr.mxu0 0.0
    %291 = vmatpush1.msra.mxu0 0.0
    %292 = vmatprep.mubr.f32.mxu0 0.0
    %293 = vmatmul.mubr.f32.gmra.mrb[0].mxu0 %v226
    %v294 = vpop.f32.mrb[0].mxu0
    %v295 = vadd.f32 0.0, %v294
    %v296 = vpop.f32.mrb[0].mxu0
    %297 = vdwg.mxu0
    %v298 = vadd.f32 %v222, %v295
    %v299 = vmul.f32 %v298, %v124
    %v300 = vtanh.pop %v299
    %v301 = vmul.f32 %v300, %v124
    %v302 = vadd.f32 %v301, %v125
    %v303 = vmul.f32 %v302, %v215
    %305 = vrot.lane.b32.xlu0 %v302, 64
    %v306 = vpop.permute.xlu0 %305
    %v308 = vmul.f32 %v302, %v306
    %310 = vrot.lane.b32.xlu0 %v308, 32
    %v311 = vpop.permute.xlu0 %310
    %v313 = vadd.f32 %v303, %v311
    %v314 = vtanh.pop %v313
    %316 = vrot.lane.b32.xlu0 %v314, 64
    %v317 = vpop.permute.xlu0 %316
    %v319 = vmul.f32 %v302, %v317
    %v320 = vld [vmem:[#allocation2 + $0x2] sm:$0x1]
    %322 = vrot.lane.b32.xlu0 %v319, 32
    %v323 = vpop.permute.xlu0 %322
    %v324 = vsel %vm44, %v323, 0
    %326 = vmatprep.subr.mxu0 0.0
    %327 = vmatpush1.msra.mxu0 %v29
    %328 = vmatprep.subr.mxu0 0.0
    %329 = vmatpush1.msra.mxu0 %v30
    %330 = vmatprep.subr.mxu0 0.0
    %331 = vmatpush1.msra.mxu0 %v31
    %332 = vmatprep.subr.mxu0 0.0
    %333 = vmatpush1.msra.mxu0 %v32
    %334 = vmatprep.subr.mxu0 0.0
    %335 = vmatpush1.msra.mxu0 0.0
    %336 = vmatprep.subr.mxu0 0.0
    %337 = vmatpush1.msra.mxu0 0.0
    %338 = vmatprep.subr.mxu0 0.0
    %339 = vmatpush1.msra.mxu0 0.0
    %340 = vmatprep.subr.mxu0 0.0
    %341 = vmatpush1.msra.mxu0 0.0
    %342 = vmatprep.subr.mxu0 0.0
    %343 = vmatpush1.msra.mxu0 0.0
    %344 = vmatprep.subr.mxu0 0.0
    %345 = vmatpush1.msra.mxu0 0.0
    %346 = vmatprep.subr.mxu0 0.0
    %347 = vmatpush1.msra.mxu0 0.0
    %348 = vmatprep.subr.mxu0 0.0
    %349 = vmatpush1.msra.mxu0 0.0
    %350 = vmatprep.subr.mxu0 0.0
    %351 = vmatpush1.msra.mxu0 0.0
    %352 = vmatprep.subr.mxu0 0.0
    %353 = vmatpush1.msra.mxu0 0.0
    %354 = vmatprep.subr.mxu0 0.0
    %355 = vmatpush1.msra.mxu0 0.0
    %356 = vmatprep.subr.mxu0 0.0
    %357 = vmatpush1.msra.mxu0 0.0
    %358 = vmatprep.subr.mxu0 0.0
    %359 = vmatpush1.msra.mxu0 0.0
    %360 = vmatprep.subr.mxu0 0.0
    %361 = vmatpush1.msra.mxu0 0.0
    %362 = vmatprep.subr.mxu0 0.0
    %363 = vmatpush1.msra.mxu0 0.0
    %364 = vmatprep.subr.mxu0 0.0
    %365 = vmatpush1.msra.mxu0 0.0
    %366 = vmatprep.subr.mxu0 0.0
    %367 = vmatpush1.msra.mxu0 0.0
    %368 = vmatprep.subr.mxu0 0.0
    %369 = vmatpush1.msra.mxu0 0.0
    %370 = vmatprep.subr.mxu0 0.0
    %371 = vmatpush1.msra.mxu0 0.0
    %372 = vmatprep.subr.mxu0 0.0
    %373 = vmatpush1.msra.mxu0 0.0
    %374 = vmatprep.subr.mxu0 0.0
    %375 = vmatpush1.msra.mxu0 0.0
    %376 = vmatprep.subr.mxu0 0.0
    %377 = vmatpush1.msra.mxu0 0.0
    %378 = vmatprep.subr.mxu0 0.0
    %379 = vmatpush1.msra.mxu0 0.0
    %380 = vmatprep.subr.mxu0 0.0
    %381 = vmatpush1.msra.mxu0 0.0
    %382 = vmatprep.subr.mxu0 0.0
    %383 = vmatpush1.msra.mxu0 0.0
    %384 = vmatprep.subr.mxu0 0.0
    %385 = vmatpush1.msra.mxu0 0.0
    %386 = vmatprep.subr.mxu0 0.0
    %387 = vmatpush1.msra.mxu0 0.0
    %388 = vmatprep.subr.mxu0 0.0
    %389 = vmatpush1.msra.mxu0 0.0
    %390 = vmatprep.mubr.f32.mxu0 0.0
    %391 = vmatmul.mubr.f32.gmra.mrb[0].mxu0 %v324
    %v392 = vpop.f32.mrb[0].mxu0
    %v393 = vadd.f32 0.0, %v392
    %v394 = vpop.f32.mrb[0].mxu0
    %395 = vdwg.mxu0
    %v396 = vadd.f32 %v320, %v393
    %v397 = vmul.f32 %v396, %v124
    %v398 = vtanh.pop %v397
    %v399 = vmul.f32 %v398, %v124
    %v400 = vadd.f32 %v399, %v125
    %v401 = vmul.f32 %v400, %v313
    %403 = vrot.lane.b32.xlu0 %v400, 64
    %v404 = vpop.permute.xlu0 %403
    %v406 = vmul.f32 %v400, %v404
    %408 = vrot.lane.b32.xlu0 %v406, 32
    %v409 = vpop.permute.xlu0 %408
    %v411 = vadd.f32 %v401, %v409
    %v412 = vtanh.pop %v411
    %414 = vrot.lane.b32.xlu0 %v412, 64
    %v415 = vpop.permute.xlu0 %414
    %v417 = vmul.f32 %v400, %v415
    %v418 = vld [vmem:[#allocation2 + $0x3] sm:$0x1]
    %420 = vrot.lane.b32.xlu0 %v417, 32
    %v421 = vpop.permute.xlu0 %420
    %v422 = vsel %vm44, %v421, 0
    %424 = vmatprep.subr.mxu0 0.0
    %425 = vmatpush1.msra.mxu0 %v29
    %426 = vmatprep.subr.mxu0 0.0
    %427 = vmatpush1.msra.mxu0 %v30
    %428 = vmatprep.subr.mxu0 0.0
    %429 = vmatpush1.msra.mxu0 %v31
    %430 = vmatprep.subr.mxu0 0.0
    %431 = vmatpush1.msra.mxu0 %v32
    %432 = vmatprep.subr.mxu0 0.0
    %433 = vmatpush1.msra.mxu0 0.0
    %434 = vmatprep.subr.mxu0 0.0
    %435 = vmatpush1.msra.mxu0 0.0
    %436 = vmatprep.subr.mxu0 0.0
    %437 = vmatpush1.msra.mxu0 0.0
    %438 = vmatprep.subr.mxu0 0.0
    %439 = vmatpush1.msra.mxu0 0.0
    %440 = vmatprep.subr.mxu0 0.0
    %441 = vmatpush1.msra.mxu0 0.0
    %442 = vmatprep.subr.mxu0 0.0
    %443 = vmatpush1.msra.mxu0 0.0
    %444 = vmatprep.subr.mxu0 0.0
    %445 = vmatpush1.msra.mxu0 0.0
    %446 = vmatprep.subr.mxu0 0.0
    %447 = vmatpush1.msra.mxu0 0.0
    %448 = vmatprep.subr.mxu0 0.0
    %449 = vmatpush1.msra.mxu0 0.0
    %450 = vmatprep.subr.mxu0 0.0
    %451 = vmatpush1.msra.mxu0 0.0
    %452 = vmatprep.subr.mxu0 0.0
    %453 = vmatpush1.msra.mxu0 0.0
    %454 = vmatprep.subr.mxu0 0.0
    %455 = vmatpush1.msra.mxu0 0.0
    %456 = vmatprep.subr.mxu0 0.0
    %457 = vmatpush1.msra.mxu0 0.0
    %458 = vmatprep.subr.mxu0 0.0
    %459 = vmatpush1.msra.mxu0 0.0
    %460 = vmatprep.subr.mxu0 0.0
    %461 = vmatpush1.msra.mxu0 0.0
    %462 = vmatprep.subr.mxu0 0.0
    %463 = vmatpush1.msra.mxu0 0.0
    %464 = vmatprep.subr.mxu0 0.0
    %465 = vmatpush1.msra.mxu0 0.0
    %466 = vmatprep.subr.mxu0 0.0
    %467 = vmatpush1.msra.mxu0 0.0
    %468 = vmatprep.subr.mxu0 0.0
    %469 = vmatpush1.msra.mxu0 0.0
    %470 = vmatprep.subr.mxu0 0.0
    %471 = vmatpush1.msra.mxu0 0.0
    %472 = vmatprep.subr.mxu0 0.0
    %473 = vmatpush1.msra.mxu0 0.0
    %474 = vmatprep.subr.mxu0 0.0
    %475 = vmatpush1.msra.mxu0 0.0
    %476 = vmatprep.subr.mxu0 0.0
    %477 = vmatpush1.msra.mxu0 0.0
    %478 = vmatprep.subr.mxu0 0.0
    %479 = vmatpush1.msra.mxu0 0.0
    %480 = vmatprep.subr.mxu0 0.0
    %481 = vmatpush1.msra.mxu0 0.0
    %482 = vmatprep.subr.mxu0 0.0
    %483 = vmatpush1.msra.mxu0 0.0
    %484 = vmatprep.subr.mxu0 0.0
    %485 = vmatpush1.msra.mxu0 0.0
    %486 = vmatprep.subr.mxu0 0.0
    %487 = vmatpush1.msra.mxu0 0.0
    %488 = vmatprep.mubr.f32.mxu0 0.0
    %489 = vmatmul.mubr.f32.gmra.mrb[0].mxu0 %v422
    %v490 = vpop.f32.mrb[0].mxu0
    %v491 = vadd.f32 0.0, %v490
    %v492 = vpop.f32.mrb[0].mxu0
    %493 = vdwg.mxu0
    %v494 = vadd.f32 %v418, %v491
    %v495 = vmul.f32 %v494, %v124
    %v496 = vtanh.pop %v495
    %v497 = vmul.f32 %v496, %v124
    %v498 = vadd.f32 %v497, %v125
    %v499 = vmul.f32 %v498, %v411
    %501 = vrot.lane.b32.xlu0 %v498, 64
    %v502 = vpop.permute.xlu0 %501
    %v504 = vmul.f32 %v498, %v502
    %506 = vrot.lane.b32.xlu0 %v504, 32
    %v507 = vpop.permute.xlu0 %506
    %v509 = vadd.f32 %v499, %v507
    %v510 = vtanh.pop %v509
    %512 = vrot.lane.b32.xlu0 %v510, 64
    %v513 = vpop.permute.xlu0 %512
    %v515 = vmul.f32 %v498, %v513
    %v516 = vld [vmem:[#allocation2 + $0x4] sm:$0x1]
    %518 = vrot.lane.b32.xlu0 %v515, 32
    %v519 = vpop.permute.xlu0 %518
    %v520 = vsel %vm44, %v519, 0
    %522 = vmatprep.subr.mxu0 0.0
    %523 = vmatpush1.msra.mxu0 %v29
    %524 = vmatprep.subr.mxu0 0.0
    %525 = vmatpush1.msra.mxu0 %v30
    %526 = vmatprep.subr.mxu0 0.0
    %527 = vmatpush1.msra.mxu0 %v31
    %528 = vmatprep.subr.mxu0 0.0
    %529 = vmatpush1.msra.mxu0 %v32
    %530 = vmatprep.subr.mxu0 0.0
    %531 = vmatpush1.msra.mxu0 0.0
    %532 = vmatprep.subr.mxu0 0.0
    %533 = vmatpush1.msra.mxu0 0.0
    %534 = vmatprep.subr.mxu0 0.0
    %535 = vmatpush1.msra.mxu0 0.0
    %536 = vmatprep.subr.mxu0 0.0
    %537 = vmatpush1.msra.mxu0 0.0
    %538 = vmatprep.subr.mxu0 0.0
    %539 = vmatpush1.msra.mxu0 0.0
    %540 = vmatprep.subr.mxu0 0.0
    %541 = vmatpush1.msra.mxu0 0.0
    %542 = vmatprep.subr.mxu0 0.0
    %543 = vmatpush1.msra.mxu0 0.0
    %544 = vmatprep.subr.mxu0 0.0
    %545 = vmatpush1.msra.mxu0 0.0
    %546 = vmatprep.subr.mxu0 0.0
    %547 = vmatpush1.msra.mxu0 0.0
    %548 = vmatprep.subr.mxu0 0.0
    %549 = vmatpush1.msra.mxu0 0.0
    %550 = vmatprep.subr.mxu0 0.0
    %551 = vmatpush1.msra.mxu0 0.0
    %552 = vmatprep.subr.mxu0 0.0
    %553 = vmatpush1.msra.mxu0 0.0
    %554 = vmatprep.subr.mxu0 0.0
    %555 = vmatpush1.msra.mxu0 0.0
    %556 = vmatprep.subr.mxu0 0.0
    %557 = vmatpush1.msra.mxu0 0.0
    %558 = vmatprep.subr.mxu0 0.0
    %559 = vmatpush1.msra.mxu0 0.0
    %560 = vmatprep.subr.mxu0 0.0
    %561 = vmatpush1.msra.mxu0 0.0
    %562 = vmatprep.subr.mxu0 0.0
    %563 = vmatpush1.msra.mxu0 0.0
    %564 = vmatprep.subr.mxu0 0.0
    %565 = vmatpush1.msra.mxu0 0.0
    %566 = vmatprep.subr.mxu0 0.0
    %567 = vmatpush1.msra.mxu0 0.0
    %568 = vmatprep.subr.mxu0 0.0
    %569 = vmatpush1.msra.mxu0 0.0
    %570 = vmatprep.subr.mxu0 0.0
    %571 = vmatpush1.msra.mxu0 0.0
    %572 = vmatprep.subr.mxu0 0.0
    %573 = vmatpush1.msra.mxu0 0.0
    %574 = vmatprep.subr.mxu0 0.0
    %575 = vmatpush1.msra.mxu0 0.0
    %576 = vmatprep.subr.mxu0 0.0
    %577 = vmatpush1.msra.mxu0 0.0
    %578 = vmatprep.subr.mxu0 0.0
    %579 = vmatpush1.msra.mxu0 0.0
    %580 = vmatprep.subr.mxu0 0.0
    %581 = vmatpush1.msra.mxu0 0.0
    %582 = vmatprep.subr.mxu0 0.0
    %583 = vmatpush1.msra.mxu0 0.0
    %584 = vmatprep.subr.mxu0 0.0
    %585 = vmatpush1.msra.mxu0 0.0
    %586 = vmatprep.mubr.f32.mxu0 0.0
    %587 = vmatmul.mubr.f32.gmra.mrb[0].mxu0 %v520
    %v588 = vpop.f32.mrb[0].mxu0
    %v589 = vadd.f32 0.0, %v588
    %v590 = vpop.f32.mrb[0].mxu0
    %591 = vdwg.mxu0
    %v592 = vadd.f32 %v516, %v589
    %v593 = vmul.f32 %v592, %v124
    %v594 = vtanh.pop %v593
    %v595 = vmul.f32 %v594, %v124
    %v596 = vadd.f32 %v595, %v125
    %v597 = vmul.f32 %v596, %v509
    %599 = vrot.lane.b32.xlu0 %v596, 64
    %v600 = vpop.permute.xlu0 %599
    %v602 = vmul.f32 %v596, %v600
    %604 = vrot.lane.b32.xlu0 %v602, 32
    %v605 = vpop.permute.xlu0 %604
    %v607 = vadd.f32 %v597, %v605
    %v608 = vtanh.pop %v607
    %610 = vrot.lane.b32.xlu0 %v608, 64
    %v611 = vpop.permute.xlu0 %610
    %v613 = vmul.f32 %v596, %v611
    %v614 = vld [vmem:[#allocation2 + $0x5] sm:$0x1]
    %616 = vrot.lane.b32.xlu0 %v613, 32
    %v617 = vpop.permute.xlu0 %616
    %v618 = vsel %vm44, %v617, 0
    %620 = vmatprep.subr.mxu0 0.0
    %621 = vmatpush1.msra.mxu0 %v29
    %622 = vmatprep.subr.mxu0 0.0
    %623 = vmatpush1.msra.mxu0 %v30
    %624 = vmatprep.subr.mxu0 0.0
    %625 = vmatpush1.msra.mxu0 %v31
    %626 = vmatprep.subr.mxu0 0.0
    %627 = vmatpush1.msra.mxu0 %v32
    %628 = vmatprep.subr.mxu0 0.0
    %629 = vmatpush1.msra.mxu0 0.0
    %630 = vmatprep.subr.mxu0 0.0
    %631 = vmatpush1.msra.mxu0 0.0
    %632 = vmatprep.subr.mxu0 0.0
    %633 = vmatpush1.msra.mxu0 0.0
    %634 = vmatprep.subr.mxu0 0.0
    %635 = vmatpush1.msra.mxu0 0.0
    %636 = vmatprep.subr.mxu0 0.0
    %637 = vmatpush1.msra.mxu0 0.0
    %638 = vmatprep.subr.mxu0 0.0
    %639 = vmatpush1.msra.mxu0 0.0
    %640 = vmatprep.subr.mxu0 0.0
    %641 = vmatpush1.msra.mxu0 0.0
    %642 = vmatprep.subr.mxu0 0.0
    %643 = vmatpush1.msra.mxu0 0.0
    %644 = vmatprep.subr.mxu0 0.0
    %645 = vmatpush1.msra.mxu0 0.0
    %646 = vmatprep.subr.mxu0 0.0
    %647 = vmatpush1.msra.mxu0 0.0
    %648 = vmatprep.subr.mxu0 0.0
    %649 = vmatpush1.msra.mxu0 0.0
    %650 = vmatprep.subr.mxu0 0.0
    %651 = vmatpush1.msra.mxu0 0.0
    %652 = vmatprep.subr.mxu0 0.0
    %653 = vmatpush1.msra.mxu0 0.0
    %654 = vmatprep.subr.mxu0 0.0
    %655 = vmatpush1.msra.mxu0 0.0
    %656 = vmatprep.subr.mxu0 0.0
    %657 = vmatpush1.msra.mxu0 0.0
    %658 = vmatprep.subr.mxu0 0.0
    %659 = vmatpush1.msra.mxu0 0.0
    %660 = vmatprep.subr.mxu0 0.0
    %661 = vmatpush1.msra.mxu0 0.0
    %662 = vmatprep.subr.mxu0 0.0
    %663 = vmatpush1.msra.mxu0 0.0
    %664 = vmatprep.subr.mxu0 0.0
    %665 = vmatpush1.msra.mxu0 0.0
    %666 = vmatprep.subr.mxu0 0.0
    %667 = vmatpush1.msra.mxu0 0.0
    %668 = vmatprep.subr.mxu0 0.0
    %669 = vmatpush1.msra.mxu0 0.0
    %670 = vmatprep.subr.mxu0 0.0
    %671 = vmatpush1.msra.mxu0 0.0
    %672 = vmatprep.subr.mxu0 0.0
    %673 = vmatpush1.msra.mxu0 0.0
    %674 = vmatprep.subr.mxu0 0.0
    %675 = vmatpush1.msra.mxu0 0.0
    %676 = vmatprep.subr.mxu0 0.0
    %677 = vmatpush1.msra.mxu0 0.0
    %678 = vmatprep.subr.mxu0 0.0
    %679 = vmatpush1.msra.mxu0 0.0
    %680 = vmatprep.subr.mxu0 0.0
    %681 = vmatpush1.msra.mxu0 0.0
    %682 = vmatprep.subr.mxu0 0.0
    %683 = vmatpush1.msra.mxu0 0.0
    %684 = vmatprep.mubr.f32.mxu0 0.0
    %685 = vmatmul.mubr.f32.gmra.mrb[0].mxu0 %v618
    %v686 = vpop.f32.mrb[0].mxu0
    %v687 = vadd.f32 0.0, %v686
    %v688 = vpop.f32.mrb[0].mxu0
    %689 = vdwg.mxu0
    %v690 = vadd.f32 %v614, %v687
    %v691 = vmul.f32 %v690, %v124
    %v692 = vtanh.pop %v691
    %v693 = vmul.f32 %v692, %v124
    %v694 = vadd.f32 %v693, %v125
    %v695 = vmul.f32 %v694, %v607
    %697 = vrot.lane.b32.xlu0 %v694, 64
    %v698 = vpop.permute.xlu0 %697
    %v700 = vmul.f32 %v694, %v698
    %702 = vrot.lane.b32.xlu0 %v700, 32
    %v703 = vpop.permute.xlu0 %702
    %v705 = vadd.f32 %v695, %v703
    %v706 = vtanh.pop %v705
    %708 = vrot.lane.b32.xlu0 %v706, 64
    %v709 = vpop.permute.xlu0 %708
    %v711 = vmul.f32 %v694, %v709
    %v712 = vld [vmem:[#allocation2 + $0x6] sm:$0x1]
    %714 = vrot.lane.b32.xlu0 %v711, 32
    %v715 = vpop.permute.xlu0 %714
    %v716 = vsel %vm44, %v715, 0
    %718 = vmatprep.subr.mxu0 0.0
    %719 = vmatpush1.msra.mxu0 %v29
    %720 = vmatprep.subr.mxu0 0.0
    %721 = vmatpush1.msra.mxu0 %v30
    %722 = vmatprep.subr.mxu0 0.0
    %723 = vmatpush1.msra.mxu0 %v31
    %724 = vmatprep.subr.mxu0 0.0
    %725 = vmatpush1.msra.mxu0 %v32
    %726 = vmatprep.subr.mxu0 0.0
    %727 = vmatpush1.msra.mxu0 0.0
    %728 = vmatprep.subr.mxu0 0.0
    %729 = vmatpush1.msra.mxu0 0.0
    %730 = vmatprep.subr.mxu0 0.0
    %731 = vmatpush1.msra.mxu0 0.0
    %732 = vmatprep.subr.mxu0 0.0
    %733 = vmatpush1.msra.mxu0 0.0
    %734 = vmatprep.subr.mxu0 0.0
    %735 = vmatpush1.msra.mxu0 0.0
    %736 = vmatprep.subr.mxu0 0.0
    %737 = vmatpush1.msra.mxu0 0.0
    %738 = vmatprep.subr.mxu0 0.0
    %739 = vmatpush1.msra.mxu0 0.0
    %740 = vmatprep.subr.mxu0 0.0
    %741 = vmatpush1.msra.mxu0 0.0
    %742 = vmatprep.subr.mxu0 0.0
    %743 = vmatpush1.msra.mxu0 0.0
    %744 = vmatprep.subr.mxu0 0.0
    %745 = vmatpush1.msra.mxu0 0.0
    %746 = vmatprep.subr.mxu0 0.0
    %747 = vmatpush1.msra.mxu0 0.0
    %748 = vmatprep.subr.mxu0 0.0
    %749 = vmatpush1.msra.mxu0 0.0
    %750 = vmatprep.subr.mxu0 0.0
    %751 = vmatpush1.msra.mxu0 0.0
    %752 = vmatprep.subr.mxu0 0.0
    %753 = vmatpush1.msra.mxu0 0.0
    %754 = vmatprep.subr.mxu0 0.0
    %755 = vmatpush1.msra.mxu0 0.0
    %756 = vmatprep.subr.mxu0 0.0
    %757 = vmatpush1.msra.mxu0 0.0
    %758 = vmatprep.subr.mxu0 0.0
    %759 = vmatpush1.msra.mxu0 0.0
    %760 = vmatprep.subr.mxu0 0.0
    %761 = vmatpush1.msra.mxu0 0.0
    %762 = vmatprep.subr.mxu0 0.0
    %763 = vmatpush1.msra.mxu0 0.0
    %764 = vmatprep.subr.mxu0 0.0
    %765 = vmatpush1.msra.mxu0 0.0
    %766 = vmatprep.subr.mxu0 0.0
    %767 = vmatpush1.msra.mxu0 0.0
    %768 = vmatprep.subr.mxu0 0.0
    %769 = vmatpush1.msra.mxu0 0.0
    %770 = vmatprep.subr.mxu0 0.0
    %771 = vmatpush1.msra.mxu0 0.0
    %772 = vmatprep.subr.mxu0 0.0
    %773 = vmatpush1.msra.mxu0 0.0
    %774 = vmatprep.subr.mxu0 0.0
    %775 = vmatpush1.msra.mxu0 0.0
    %776 = vmatprep.subr.mxu0 0.0
    %777 = vmatpush1.msra.mxu0 0.0
    %778 = vmatprep.subr.mxu0 0.0
    %779 = vmatpush1.msra.mxu0 0.0
    %780 = vmatprep.subr.mxu0 0.0
    %781 = vmatpush1.msra.mxu0 0.0
    %782 = vmatprep.mubr.f32.mxu0 0.0
    %783 = vmatmul.mubr.f32.gmra.mrb[0].mxu0 %v716
    %v784 = vpop.f32.mrb[0].mxu0
    %v785 = vadd.f32 0.0, %v784
    %v786 = vpop.f32.mrb[0].mxu0
    %787 = vdwg.mxu0
    %v788 = vadd.f32 %v712, %v785
    %v789 = vmul.f32 %v788, %v124
    %v790 = vtanh.pop %v789
    %v791 = vmul.f32 %v790, %v124
    %v792 = vadd.f32 %v791, %v125
    %v793 = vmul.f32 %v792, %v705
    %795 = vrot.lane.b32.xlu0 %v792, 64
    %v796 = vpop.permute.xlu0 %795
    %v798 = vmul.f32 %v792, %v796
    %800 = vrot.lane.b32.xlu0 %v798, 32
    %v801 = vpop.permute.xlu0 %800
    %v803 = vadd.f32 %v793, %v801
    %v804 = vtanh.pop %v803
    %806 = vrot.lane.b32.xlu0 %v804, 64
    %v807 = vpop.permute.xlu0 %806
    %v809 = vmul.f32 %v792, %v807
    %v810 = vld [vmem:[#allocation2 + $0x7] sm:$0x1]
    %812 = vrot.lane.b32.xlu0 %v809, 32
    %v813 = vpop.permute.xlu0 %812
    %v814 = vsel %vm44, %v813, 0
    %816 = vmatprep.subr.mxu0 0.0
    %817 = vmatpush1.msra.mxu0 %v29
    %818 = vmatprep.subr.mxu0 0.0
    %819 = vmatpush1.msra.mxu0 %v30
    %820 = vmatprep.subr.mxu0 0.0
    %821 = vmatpush1.msra.mxu0 %v31
    %822 = vmatprep.subr.mxu0 0.0
    %823 = vmatpush1.msra.mxu0 %v32
    %824 = vmatprep.subr.mxu0 0.0
    %825 = vmatpush1.msra.mxu0 0.0
    %826 = vmatprep.subr.mxu0 0.0
    %827 = vmatpush1.msra.mxu0 0.0
    %828 = vmatprep.subr.mxu0 0.0
    %829 = vmatpush1.msra.mxu0 0.0
    %830 = vmatprep.subr.mxu0 0.0
    %831 = vmatpush1.msra.mxu0 0.0
    %832 = vmatprep.subr.mxu0 0.0
    %833 = vmatpush1.msra.mxu0 0.0
    %834 = vmatprep.subr.mxu0 0.0
    %835 = vmatpush1.msra.mxu0 0.0
    %836 = vmatprep.subr.mxu0 0.0
    %837 = vmatpush1.msra.mxu0 0.0
    %838 = vmatprep.subr.mxu0 0.0
    %839 = vmatpush1.msra.mxu0 0.0
    %840 = vmatprep.subr.mxu0 0.0
    %841 = vmatpush1.msra.mxu0 0.0
    %842 = vmatprep.subr.mxu0 0.0
    %843 = vmatpush1.msra.mxu0 0.0
    %844 = vmatprep.subr.mxu0 0.0
    %845 = vmatpush1.msra.mxu0 0.0
    %846 = vmatprep.subr.mxu0 0.0
    %847 = vmatpush1.msra.mxu0 0.0
    %848 = vmatprep.subr.mxu0 0.0
    %849 = vmatpush1.msra.mxu0 0.0
    %850 = vmatprep.subr.mxu0 0.0
    %851 = vmatpush1.msra.mxu0 0.0
    %852 = vmatprep.subr.mxu0 0.0
    %853 = vmatpush1.msra.mxu0 0.0
    %854 = vmatprep.subr.mxu0 0.0
    %855 = vmatpush1.msra.mxu0 0.0
    %856 = vmatprep.subr.mxu0 0.0
    %857 = vmatpush1.msra.mxu0 0.0
    %858 = vmatprep.subr.mxu0 0.0
    %859 = vmatpush1.msra.mxu0 0.0
    %860 = vmatprep.subr.mxu0 0.0
    %861 = vmatpush1.msra.mxu0 0.0
    %862 = vmatprep.subr.mxu0 0.0
    %863 = vmatpush1.msra.mxu0 0.0
    %864 = vmatprep.subr.mxu0 0.0
    %865 = vmatpush1.msra.mxu0 0.0
    %866 = vmatprep.subr.mxu0 0.0
    %867 = vmatpush1.msra.mxu0 0.0
    %868 = vmatprep.subr.mxu0 0.0
    %869 = vmatpush1.msra.mxu0 0.0
    %870 = vmatprep.subr.mxu0 0.0
    %871 = vmatpush1.msra.mxu0 0.0
    %872 = vmatprep.subr.mxu0 0.0
    %873 = vmatpush1.msra.mxu0 0.0
    %874 = vmatprep.subr.mxu0 0.0
    %875 = vmatpush1.msra.mxu0 0.0
    %876 = vmatprep.subr.mxu0 0.0
    %877 = vmatpush1.msra.mxu0 0.0
    %878 = vmatprep.subr.mxu0 0.0
    %879 = vmatpush1.msra.mxu0 0.0
    %880 = vmatprep.mubr.f32.mxu0 0.0
    %881 = vmatmul.mubr.f32.gmra.mrb[0].mxu0 %v814
    %v882 = vpop.f32.mrb[0].mxu0
    %v883 = vadd.f32 0.0, %v882
    %v884 = vpop.f32.mrb[0].mxu0
    %885 = vdwg.mxu0
    %v886 = vadd.f32 %v810, %v883
    %v887 = vmul.f32 %v886, %v124
    %v888 = vtanh.pop %v887
    %v889 = vmul.f32 %v888, %v124
    %v890 = vadd.f32 %v889, %v125
    %v891 = vmul.f32 %v890, %v803
    %893 = vrot.lane.b32.xlu0 %v890, 64
    %v894 = vpop.permute.xlu0 %893
    %v896 = vmul.f32 %v890, %v894
    %898 = vrot.lane.b32.xlu0 %v896, 32
    %v899 = vpop.permute.xlu0 %898
    %v901 = vadd.f32 %v891, %v899
    %v902 = vtanh.pop %v901
    %904 = vrot.lane.b32.xlu0 %v902, 64
    %v905 = vpop.permute.xlu0 %904
    %v907 = vmul.f32 %v890, %v905
    %909 = vrot.lane.b32.xlu0 %v907, 32
    %v910 = vpop.permute.xlu0 %909
    %v911 = vsel %vm44, %v910, 0
    %913 = vmatprep.subr.mxu0 0.0
    %914 = vmatpush1.msra.mxu0 %v35
    %915 = vmatprep.subr.mxu0 0.0
    %916 = vmatpush1.msra.mxu0 %v36
    %917 = vmatprep.subr.mxu0 0.0
    %918 = vmatpush1.msra.mxu0 %v37
    %919 = vmatprep.subr.mxu0 0.0
    %920 = vmatpush1.msra.mxu0 %v38
    %921 = vmatprep.subr.mxu0 0.0
    %922 = vmatpush1.msra.mxu0 0.0
    %923 = vmatprep.subr.mxu0 0.0
    %924 = vmatpush1.msra.mxu0 0.0
    %925 = vmatprep.subr.mxu0 0.0
    %926 = vmatpush1.msra.mxu0 0.0
    %927 = vmatprep.subr.mxu0 0.0
    %928 = vmatpush1.msra.mxu0 0.0
    %929 = vmatprep.subr.mxu0 0.0
    %930 = vmatpush1.msra.mxu0 0.0
    %931 = vmatprep.subr.mxu0 0.0
    %932 = vmatpush1.msra.mxu0 0.0
    %933 = vmatprep.subr.mxu0 0.0
    %934 = vmatpush1.msra.mxu0 0.0
    %935 = vmatprep.subr.mxu0 0.0
    %936 = vmatpush1.msra.mxu0 0.0
    %937 = vmatprep.subr.mxu0 0.0
    %938 = vmatpush1.msra.mxu0 0.0
    %939 = vmatprep.subr.mxu0 0.0
    %940 = vmatpush1.msra.mxu0 0.0
    %941 = vmatprep.subr.mxu0 0.0
    %942 = vmatpush1.msra.mxu0 0.0
    %943 = vmatprep.subr.mxu0 0.0
    %944 = vmatpush1.msra.mxu0 0.0
    %945 = vmatprep.subr.mxu0 0.0
    %946 = vmatpush1.msra.mxu0 0.0
    %947 = vmatprep.subr.mxu0 0.0
    %948 = vmatpush1.msra.mxu0 0.0
    %949 = vmatprep.subr.mxu0 0.0
    %950 = vmatpush1.msra.mxu0 0.0
    %951 = vmatprep.subr.mxu0 0.0
    %952 = vmatpush1.msra.mxu0 0.0
    %953 = vmatprep.subr.mxu0 0.0
    %954 = vmatpush1.msra.mxu0 0.0
    %955 = vmatprep.subr.mxu0 0.0
    %956 = vmatpush1.msra.mxu0 0.0
    %957 = vmatprep.subr.mxu0 0.0
    %958 = vmatpush1.msra.mxu0 0.0
    %959 = vmatprep.subr.mxu0 0.0
    %960 = vmatpush1.msra.mxu0 0.0
    %961 = vmatprep.subr.mxu0 0.0
    %962 = vmatpush1.msra.mxu0 0.0
    %963 = vmatprep.subr.mxu0 0.0
    %964 = vmatpush1.msra.mxu0 0.0
    %965 = vmatprep.subr.mxu0 0.0
    %966 = vmatpush1.msra.mxu0 0.0
    %967 = vmatprep.subr.mxu0 0.0
    %968 = vmatpush1.msra.mxu0 0.0
    %969 = vmatprep.subr.mxu0 0.0
    %970 = vmatpush1.msra.mxu0 0.0
    %971 = vmatprep.subr.mxu0 0.0
    %972 = vmatpush1.msra.mxu0 0.0
    %973 = vmatprep.subr.mxu0 0.0
    %974 = vmatpush1.msra.mxu0 0.0
    %975 = vmatprep.subr.mxu0 0.0
    %976 = vmatpush1.msra.mxu0 0.0
    %977 = vmatprep.mubr.f32.mxu0 0.0
    %978 = vmatmul.mubr.f32.gmra.mrb[0].mxu0 %v911
    %v979 = vpop.f32.mrb[0].mxu0
    %v980 = vadd.f32 %v34, %v979
    %v981 = vpop.f32.mrb[0].mxu0
    %982 = vdwg.mxu0
    %983 = vst [vmem:[%s2] sm:$0x1] %v980
    // Predicated region
    $region14: #{my_lstm_forward.1} parent=1 // pred_check
      _
    $region15: #{my_lstm_forward.1} parent=1 // pred_check_branch
      %985 = sbr.rel (0) target = $region17
    $region16: #{my_lstm_forward.1} parent=1 // pred_region
      _
    $region17: #{my_lstm_forward.1} parent=1 // pred_fallthru
      _
    // Predicated region
    $region18: #{my_lstm_forward.1} parent=1 // pred_check
      _
    $region19: #{my_lstm_forward.1} parent=1 // pred_check_branch
      %987 = sbr.rel (0) target = $region21
    $region20: #{my_lstm_forward.1} parent=1 // pred_region
      _
    $region21: #{my_lstm_forward.1} parent=1 // pred_fallthru
      _
    %988 = vsyncpa [#allocation4], 1

</llo_original>
